<compile_context>
chip_gen: v5e
topology: v5e:2x2
jax: 0.10.0
libtpu: 0.0.40
codegen_flags: <defaults>
</compile_context>

<pallas_src>
import numpy as np
import jax
import jax.numpy as jnp
from jax import lax
from jax.experimental import pallas as pl
from jax.experimental.pallas import tpu as pltpu

_HALO = 2  # kernel_size - 1: extra input rows each output strip needs below it.


def make_sobel_weight(out_channels, in_channels, kernel_size=3, groups=1):
    """Replicates SobelConv2d.__init__ weight construction (numpy, deterministic)."""
    assert kernel_size % 2 == 1
    assert out_channels % 4 == 0
    w = np.zeros((out_channels, in_channels // groups, kernel_size, kernel_size),
                 dtype=np.float32)
    kmid = kernel_size // 2
    for idx in range(out_channels):
        if idx % 4 == 0:
            w[idx, :, 0, :] = -1
            w[idx, :, 0, kmid] = -2
            w[idx, :, -1, :] = 1
            w[idx, :, -1, kmid] = 2
        elif idx % 4 == 1:
            w[idx, :, :, 0] = -1
            w[idx, :, kmid, 0] = -2
            w[idx, :, :, -1] = 1
            w[idx, :, kmid, -1] = 2
        elif idx % 4 == 2:
            w[idx, :, 0, 0] = -2
            for i in range(0, kmid + 1):
                w[idx, :, kmid - i, i] = -1
                w[idx, :, kernel_size - 1 - i, kmid + i] = 1
            w[idx, :, -1, -1] = 2
        else:
            w[idx, :, -1, 0] = -2
            for i in range(0, kmid + 1):
                w[idx, :, kmid + i, i] = -1
                w[idx, :, i, kmid + i] = 1
            w[idx, :, 0, -1] = 2
    return w


def _sobel_strip_kernel(x_ref, xh_ref, f_ref, b_ref, o_ref,
                        xs_ref, hd_ref, hs_ref, p_ref, q_ref):
    """One (image, H-strip) grid step.

    x_ref : (1, C, TH, W)   main input strip (VMEM, auto-pipelined)
    xh_ref: (1, C, 8,  W)   sublane-aligned halo block just below the strip
    f_ref : (OC,) SMEM      sobel_factor
    b_ref : (OC,) SMEM      bias
    o_ref : (1, OC, TH, OW) output strip
    xs_ref: (TH+8, W)  f32  channel-summed strip (+halo rows) scratch
    hd/hs/p/q_ref: (TH+2, OW) f32  shared horizontal partial sums
    """
    _, _, TH, _ = x_ref.shape
    _, OC, _, OW = o_ref.shape
    R = TH + _HALO  # rows of the channel-summed strip actually consumed

    # Channel sum (exact: the Sobel taps are identical across input channels).
    # Compute in f32 regardless of storage dtype (bf16-safe, v5e-safe).
    xs_ref[pl.ds(0, TH), :] = jnp.sum(x_ref[0].astype(jnp.float32), axis=0)
    xs_ref[pl.ds(TH, 8), :] = jnp.sum(xh_ref[0].astype(jnp.float32), axis=0)

    # Shared horizontal (lane-direction) partial sums, built once per strip and
    # kept in VMEM scratch refs; vertical offsets below are plain pl.ds reads,
    # so no full shifted-window copies are materialized.
    h0 = xs_ref[pl.ds(0, R), pl.ds(0, OW)]
    h1 = xs_ref[pl.ds(0, R), pl.ds(1, OW)]
    h2 = xs_ref[pl.ds(0, R), pl.ds(2, OW)]
    hd_ref[...] = h2 - h0                 # horizontal [-1, 0, +1]
    hs_ref[...] = (h0 + h2) + 2.0 * h1    # horizontal [+1, +2, +1]
    p_ref[...] = 2.0 * h0 + h1            # horizontal [+2, +1,  0]
    q_ref[...] = h1 + 2.0 * h2            # horizontal [ 0, +1, +2]

    top, mid, bot = pl.ds(0, TH), pl.ds(1, TH), pl.ds(2, TH)
    d_mid = hd_ref[mid, :]
    # The 4 Sobel directions; shared by every output channel via oc % 4.
    base = (
        hs_ref[bot, :] - hs_ref[top, :],                 # idx%4==0: Gy
        hd_ref[top, :] + 2.0 * d_mid + hd_ref[bot, :],   # idx%4==1: Gx
        d_mid + q_ref[bot, :] - p_ref[top, :],           # idx%4==2: diag "\"
        d_mid + q_ref[top, :] - p_ref[bot, :],           # idx%4==3: diag "/"
    )
    for oc in range(OC):  # unrolled; factor/bias applied exactly once per channel
        o_ref[0, oc] = (f_ref[oc] * base[oc % 4] + b_ref[oc]).astype(o_ref.dtype)


def _pick_strip_rows(OH, C, W, OC, OW, io_bytes, *, budget_bytes=12 << 20, cap=128):
    """Largest multiple-of-8 strip height whose per-step VMEM footprint
    (double-buffered inputs + output + f32 scratch) stays under budget_bytes.
    Budget (12 MiB) < v5e's 16 MiB default scoped VMEM < v6e/v7x defaults, and
    re-derived against v7x's 64 MiB physical VMEM with large headroom."""
    def rup(v, m):
        return ((v + m - 1) // m) * m

    th = min(cap, (OH // 8) * 8)
    w_l, ow_l = rup(W, 128), rup(OW, 128)

    def footprint(t):
        return (2 * C * t * w_l * io_bytes            # main input strip x2 buffers
                + 2 * C * 8 * w_l * io_bytes          # halo block x2 buffers
                + 2 * OC * t * ow_l * io_bytes        # output strip x2 buffers
                + 4 * ((t + 8) * w_l + 4 * rup(t + _HALO, 8) * ow_l))  # f32 scratch

    while th > 8 and footprint(th) > budget_bytes:
        th -= 8
    return th


def sobel_conv2d(x, sobel_weight, sobel_factor, bias=None, *,
                 stride=1, padding=0, dilation=1, groups=1):
    """Pallas implementation of SobelConv2d.forward (module defaults).
    NCHW in, NCHW out; output dtype == input dtype; f32 accumulation inside."""
    if not (stride == 1 and padding == 0 and dilation == 1 and groups == 1):
        raise NotImplementedError("only the module defaults are implemented")
    N, C, H, W = x.shape

    w_np = np.asarray(sobel_weight, dtype=np.float32)
    OC, Cg, KH, KW = w_np.shape
    if KH != 3 or KW != 3:
        # TODO(synk): general odd kernel_size needs the generic tap path.
        raise NotImplementedError("kernel_size=3 only")
    assert Cg == C, "groups != 1 not implemented"
    assert OC % 4 == 0
    # The module's fixed (requires_grad=False) Sobel pattern.  This equality
    # guarantees both the channel-sum trick and the separable factorization.
    # Note: taps/factor structure is resolved at Python time (non-traced buffers).
    assert np.array_equal(w_np, make_sobel_weight(OC, C, 3)), \
        "weight must be the SobelConv2d pattern"

    OH, OW = H - (KH - 1), W - (KW - 1)
    if OH < 8 or OW < 1:
        # TODO(synk): sub-8-row outputs: defer such tiny images to plain XLA conv.
        raise NotImplementedError("needs at least 8 output rows")

    io_bytes = jnp.dtype(x.dtype).itemsize
    TH = _pick_strip_rows(OH, C, W, OC, OW, io_bytes)
    n_strips = pl.cdiv(OH, TH)
    thb = TH // 8                     # halo offset in 8-row blocks
    max_hblk = (H - 1) // 8           # last legal 8-row block (clamp for the
                                      # final strip, whose halo rows are unused)

    f = jnp.reshape(sobel_factor, (OC,)).astype(jnp.float32)
    b = (jnp.zeros((OC,), jnp.float32) if bias is None
         else jnp.reshape(bias, (OC,)).astype(jnp.float32))

    return pl.pallas_call(
        _sobel_strip_kernel,
        out_shape=jax.ShapeDtypeStruct((N, OC, OH, OW), x.dtype),
        grid=(N, n_strips),
        in_specs=[
            # Disjoint TH-row input strips (ragged final strip reads are masked
            # and only feed output rows that are themselves masked on store).
            pl.BlockSpec((1, C, TH, W), lambda n, h: (n, 0, h, 0)),
            # 8-row, sublane-aligned halo block starting at row (h+1)*TH.
            pl.BlockSpec((1, C, 8, W),
                         lambda n, h: (n, 0, jnp.minimum((h + 1) * thb, max_hblk), 0)),
            pl.BlockSpec(memory_space=pltpu.MemorySpace.SMEM),   # sobel_factor
            pl.BlockSpec(memory_space=pltpu.MemorySpace.SMEM),   # bias
        ],
        out_specs=pl.BlockSpec((1, OC, TH, OW), lambda n, h: (n, 0, h, 0)),
        scratch_shapes=[
            pltpu.VMEM((TH + 8, W), jnp.float32),          # channel-summed strip
            pltpu.VMEM((TH + _HALO, OW), jnp.float32),     # horizontal diff
            pltpu.VMEM((TH + _HALO, OW), jnp.float32),     # horizontal smooth
            pltpu.VMEM((TH + _HALO, OW), jnp.float32),     # horizontal [2,1,0]
            pltpu.VMEM((TH + _HALO, OW), jnp.float32),     # horizontal [0,1,2]
        ],
        compiler_params=pltpu.CompilerParams(
            dimension_semantics=("parallel", "parallel")),
    )(x, x, f, b)


def _reference(x, sobel_weight, sobel_factor, bias):
    """Plain-JAX reference (f32, highest precision)."""
    w = jnp.asarray(sobel_weight, jnp.float32) * jnp.asarray(sobel_factor, jnp.float32)
    out = lax.conv_general_dilated(
        x.astype(jnp.float32), w, window_strides=(1, 1), padding="VALID",
        dimension_numbers=("NCHW", "OIHW", "NCHW"),
        precision=lax.Precision.HIGHEST)
    return out + jnp.reshape(jnp.asarray(bias, jnp.float32), (1, -1, 1, 1))


if __name__ == "__main__":
    key = jax.random.PRNGKey(0)
    k1, k2, k3, k4, k5, k6 = jax.random.split(key, 6)

    # ---- Test 1: module shapes (in_channels=3, out_channels=4), f32, 16x16.
    in_channels, out_channels = 3, 4
    x = jax.random.normal(k1, (2, in_channels, 16, 16), dtype=jnp.float32)
    sobel_weight = make_sobel_weight(out_channels, in_channels, 3)
    bias = 0.1 * jax.random.normal(k2, (out_channels,), dtype=jnp.float32)
    sobel_factor = 1.0 + 0.1 * jax.random.normal(
        k3, (out_channels, 1, 1, 1), dtype=jnp.float32)

    out = jax.block_until_ready(sobel_conv2d(x, sobel_weight, sobel_factor, bias))
    ref = _reference(x, sobel_weight, sobel_factor, bias)
    np.testing.assert_allclose(np.asarray(out), np.asarray(ref), rtol=1e-5, atol=1e-5)
    assert out.shape == (2, out_channels, 14, 14) and out.dtype == jnp.float32

    # ---- Test 2: bf16 activations (storage-only), lane-dense W, OC=8,
    #              multiple H strips with a ragged final strip.
    oc2, ic2 = 8, 4
    x2 = jax.random.normal(k4, (1, ic2, 40, 160), dtype=jnp.float32).astype(jnp.bfloat16)
    w2 = make_sobel_weight(oc2, ic2, 3)
    bias2 = 0.1 * jax.random.normal(k5, (oc2,), dtype=jnp.float32)
    factor2 = 1.0 + 0.1 * jax.random.normal(k6, (oc2, 1, 1, 1), dtype=jnp.float32)

    out2 = jax.block_until_ready(sobel_conv2d(x2, w2, factor2, bias2))
    ref2 = _reference(x2, w2, factor2, bias2)      # f32 reference of same bf16 input
    assert out2.shape == (1, oc2, 38, 158) and out2.dtype == jnp.bfloat16
    np.testing.assert_allclose(np.asarray(out2, dtype=np.float32), np.asarray(ref2),
                               rtol=2e-2, atol=2e-2)

    print("KERNEL_OK")
</pallas_src>

<mosaic_0001>
module attributes {stable_mosaic.version = 11 : i64} {
  func.func @_sobel_strip_kernel(%arg0: i32, %arg1: i32, %arg2: memref<1x3x8x16xf32, #tpu.memory_space<vmem>>, %arg3: memref<1x3x8x16xf32, #tpu.memory_space<vmem>>, %arg4: memref<4xf32, #tpu.memory_space<smem>>, %arg5: memref<4xf32, #tpu.memory_space<smem>>, %arg6: memref<1x4x8x14xf32, #tpu.memory_space<vmem>>, %arg7: memref<16x16xf32, #tpu.memory_space<vmem>>, %arg8: memref<10x14xf32, #tpu.memory_space<vmem>>, %arg9: memref<10x14xf32, #tpu.memory_space<vmem>>, %arg10: memref<10x14xf32, #tpu.memory_space<vmem>>, %arg11: memref<10x14xf32, #tpu.memory_space<vmem>>) attributes {dimension_semantics = [#tpu.dimension_semantics<parallel>, #tpu.dimension_semantics<parallel>], iteration_bounds = array<i64: 2, 2>, scalar_prefetch = 0 : i64, scratch_operands = 5 : i64, tpu.core_type = #tpu.core_type<tc>, window_params = [{transform_indices = @transform_0, window_bounds = array<i64: 1, 3, 8, 16>}, {transform_indices = @transform_1, window_bounds = array<i64: 1, 3, 8, 16>}, {transform_indices = @transform_2, window_bounds = array<i64: 4>}, {transform_indices = @transform_3, window_bounds = array<i64: 4>}, {transform_indices = @transform_4, window_bounds = array<i64: 1, 4, 8, 14>}]} {
    %c0 = arith.constant 0 : index
    %c0_0 = arith.constant 0 : index
    %c0_1 = arith.constant 0 : index
    %c0_2 = arith.constant 0 : index
    %0 = vector.load %arg2[%c0, %c0_0, %c0_1, %c0_2] : memref<1x3x8x16xf32, #tpu.memory_space<vmem>>, vector<1x3x8x16xf32>
    %1 = vector.shape_cast %0 : vector<1x3x8x16xf32> to vector<3x8x16xf32>
    %cst = arith.constant dense<0.000000e+00> : vector<8x16xf32>
    %2 = vector.multi_reduction <add>, %1, %cst [0] : vector<3x8x16xf32> to vector<8x16xf32>
    %c0_3 = arith.constant 0 : index
    %c0_4 = arith.constant 0 : index
    %3 = vector.load %arg7[%c0_3, %c0_4] : memref<16x16xf32, #tpu.memory_space<vmem>>, vector<8x16xf32>
    tpu.vector_store %arg7[%c0_3, %c0_4], %2 {strides = array<i32>} : memref<16x16xf32, #tpu.memory_space<vmem>>, vector<8x16xf32>,
    %c0_5 = arith.constant 0 : index
    %c0_6 = arith.constant 0 : index
    %c0_7 = arith.constant 0 : index
    %c0_8 = arith.constant 0 : index
    %4 = vector.load %arg3[%c0_5, %c0_6, %c0_7, %c0_8] : memref<1x3x8x16xf32, #tpu.memory_space<vmem>>, vector<1x3x8x16xf32>
    %5 = vector.shape_cast %4 : vector<1x3x8x16xf32> to vector<3x8x16xf32>
    %cst_9 = arith.constant dense<0.000000e+00> : vector<8x16xf32>
    %6 = vector.multi_reduction <add>, %5, %cst_9 [0] : vector<3x8x16xf32> to vector<8x16xf32>
    %c8 = arith.constant 8 : index
    %c0_10 = arith.constant 0 : index
    %7 = vector.load %arg7[%c8, %c0_10] : memref<16x16xf32, #tpu.memory_space<vmem>>, vector<8x16xf32>
    tpu.vector_store %arg7[%c8, %c0_10], %6 {strides = array<i32>} : memref<16x16xf32, #tpu.memory_space<vmem>>, vector<8x16xf32>,
    %c0_11 = arith.constant 0 : index
    %c0_12 = arith.constant 0 : index
    %8 = vector.load %arg7[%c0_11, %c0_12] : memref<16x16xf32, #tpu.memory_space<vmem>>, vector<10x14xf32>
    %c0_13 = arith.constant 0 : index
    %c1 = arith.constant 1 : index
    %9 = vector.load %arg7[%c0_13, %c1] : memref<16x16xf32, #tpu.memory_space<vmem>>, vector<10x14xf32>
    %c0_14 = arith.constant 0 : index
    %c2 = arith.constant 2 : index
    %10 = vector.load %arg7[%c0_14, %c2] : memref<16x16xf32, #tpu.memory_space<vmem>>, vector<10x14xf32>
    %11 = arith.subf %10, %8 : vector<10x14xf32>
    %c0_15 = arith.constant 0 : index
    %c0_16 = arith.constant 0 : index
    %12 = vector.load %arg8[%c0_15, %c0_16] : memref<10x14xf32, #tpu.memory_space<vmem>>, vector<10x14xf32>
    tpu.vector_store %arg8[%c0_15, %c0_16], %11 {strides = array<i32>} : memref<10x14xf32, #tpu.memory_space<vmem>>, vector<10x14xf32>,
    %13 = arith.addf %8, %10 : vector<10x14xf32>
    %cst_17 = arith.constant 2.000000e+00 : f32
    %14 = vector.broadcast %cst_17 : f32 to vector<10x14xf32>
    %15 = arith.mulf %14, %9 : vector<10x14xf32>
    %16 = arith.addf %13, %15 : vector<10x14xf32>
    %c0_18 = arith.constant 0 : index
    %c0_19 = arith.constant 0 : index
    %17 = vector.load %arg9[%c0_18, %c0_19] : memref<10x14xf32, #tpu.memory_space<vmem>>, vector<10x14xf32>
    tpu.vector_store %arg9[%c0_18, %c0_19], %16 {strides = array<i32>} : memref<10x14xf32, #tpu.memory_space<vmem>>, vector<10x14xf32>,
    %cst_20 = arith.constant 2.000000e+00 : f32
    %18 = vector.broadcast %cst_20 : f32 to vector<10x14xf32>
    %19 = arith.mulf %18, %8 : vector<10x14xf32>
    %20 = arith.addf %19, %9 : vector<10x14xf32>
    %c0_21 = arith.constant 0 : index
    %c0_22 = arith.constant 0 : index
    %21 = vector.load %arg10[%c0_21, %c0_22] : memref<10x14xf32, #tpu.memory_space<vmem>>, vector<10x14xf32>
    tpu.vector_store %arg10[%c0_21, %c0_22], %20 {strides = array<i32>} : memref<10x14xf32, #tpu.memory_space<vmem>>, vector<10x14xf32>,
    %cst_23 = arith.constant 2.000000e+00 : f32
    %22 = vector.broadcast %cst_23 : f32 to vector<10x14xf32>
    %23 = arith.mulf %22, %10 : vector<10x14xf32>
    %24 = arith.addf %9, %23 : vector<10x14xf32>
    %c0_24 = arith.constant 0 : index
    %c0_25 = arith.constant 0 : index
    %25 = vector.load %arg11[%c0_24, %c0_25] : memref<10x14xf32, #tpu.memory_space<vmem>>, vector<10x14xf32>
    tpu.vector_store %arg11[%c0_24, %c0_25], %24 {strides = array<i32>} : memref<10x14xf32, #tpu.memory_space<vmem>>, vector<10x14xf32>,
    %c1_26 = arith.constant 1 : index
    %c0_27 = arith.constant 0 : index
    %26 = vector.load %arg8[%c1_26, %c0_27] : memref<10x14xf32, #tpu.memory_space<vmem>>, vector<8x14xf32>
    %c2_28 = arith.constant 2 : index
    %c0_29 = arith.constant 0 : index
    %27 = vector.load %arg9[%c2_28, %c0_29] : memref<10x14xf32, #tpu.memory_space<vmem>>, vector<8x14xf32>
    %c0_30 = arith.constant 0 : index
    %c0_31 = arith.constant 0 : index
    %28 = vector.load %arg9[%c0_30, %c0_31] : memref<10x14xf32, #tpu.memory_space<vmem>>, vector<8x14xf32>
    %29 = arith.subf %27, %28 : vector<8x14xf32>
    %c0_32 = arith.constant 0 : index
    %c0_33 = arith.constant 0 : index
    %30 = vector.load %arg8[%c0_32, %c0_33] : memref<10x14xf32, #tpu.memory_space<vmem>>, vector<8x14xf32>
    %cst_34 = arith.constant 2.000000e+00 : f32
    %31 = vector.broadcast %cst_34 : f32 to vector<8x14xf32>
    %32 = arith.mulf %31, %26 : vector<8x14xf32>
    %33 = arith.addf %30, %32 : vector<8x14xf32>
    %c2_35 = arith.constant 2 : index
    %c0_36 = arith.constant 0 : index
    %34 = vector.load %arg8[%c2_35, %c0_36] : memref<10x14xf32, #tpu.memory_space<vmem>>, vector<8x14xf32>
    %35 = arith.addf %33, %34 : vector<8x14xf32>
    %c2_37 = arith.constant 2 : index
    %c0_38 = arith.constant 0 : index
    %36 = vector.load %arg11[%c2_37, %c0_38] : memref<10x14xf32, #tpu.memory_space<vmem>>, vector<8x14xf32>
    %37 = arith.addf %26, %36 : vector<8x14xf32>
    %c0_39 = arith.constant 0 : index
    %c0_40 = arith.constant 0 : index
    %38 = vector.load %arg10[%c0_39, %c0_40] : memref<10x14xf32, #tpu.memory_space<vmem>>, vector<8x14xf32>
    %39 = arith.subf %37, %38 : vector<8x14xf32>
    %c0_41 = arith.constant 0 : index
    %c0_42 = arith.constant 0 : index
    %40 = vector.load %arg11[%c0_41, %c0_42] : memref<10x14xf32, #tpu.memory_space<vmem>>, vector<8x14xf32>
    %41 = arith.addf %26, %40 : vector<8x14xf32>
    %c2_43 = arith.constant 2 : index
    %c0_44 = arith.constant 0 : index
    %42 = vector.load %arg10[%c2_43, %c0_44] : memref<10x14xf32, #tpu.memory_space<vmem>>, vector<8x14xf32>
    %43 = arith.subf %41, %42 : vector<8x14xf32>
    %c0_45 = arith.constant 0 : index
    %44 = memref.load %arg4[%c0_45] : memref<4xf32, #tpu.memory_space<smem>>
    %45 = vector.broadcast %44 : f32 to vector<8x14xf32>
    %46 = arith.mulf %45, %29 : vector<8x14xf32>
    %c0_46 = arith.constant 0 : index
    %47 = memref.load %arg5[%c0_46] : memref<4xf32, #tpu.memory_space<smem>>
    %48 = vector.broadcast %47 : f32 to vector<8x14xf32>
    %49 = arith.addf %46, %48 : vector<8x14xf32>
    %c0_47 = arith.constant 0 : index
    %c0_48 = arith.constant 0 : index
    %c0_49 = arith.constant 0 : index
    %c0_50 = arith.constant 0 : index
    %50 = vector.load %arg6[%c0_47, %c0_48, %c0_49, %c0_50] : memref<1x4x8x14xf32, #tpu.memory_space<vmem>>, vector<1x1x8x14xf32>
    %51 = vector.shape_cast %50 : vector<1x1x8x14xf32> to vector<8x14xf32>
    %52 = vector.shape_cast %49 : vector<8x14xf32> to vector<1x1x8x14xf32>
    tpu.vector_store %arg6[%c0_47, %c0_48, %c0_49, %c0_50], %52 {strides = array<i32>} : memref<1x4x8x14xf32, #tpu.memory_space<vmem>>, vector<1x1x8x14xf32>,
    %c1_51 = arith.constant 1 : index
    %53 = memref.load %arg4[%c1_51] : memref<4xf32, #tpu.memory_space<smem>>
    %54 = vector.broadcast %53 : f32 to vector<8x14xf32>
    %55 = arith.mulf %54, %35 : vector<8x14xf32>
    %c1_52 = arith.constant 1 : index
    %56 = memref.load %arg5[%c1_52] : memref<4xf32, #tpu.memory_space<smem>>
    %57 = vector.broadcast %56 : f32 to vector<8x14xf32>
    %58 = arith.addf %55, %57 : vector<8x14xf32>
    %c0_53 = arith.constant 0 : index
    %c1_54 = arith.constant 1 : index
    %c0_55 = arith.constant 0 : index
    %c0_56 = arith.constant 0 : index
    %59 = vector.load %arg6[%c0_53, %c1_54, %c0_55, %c0_56] : memref<1x4x8x14xf32, #tpu.memory_space<vmem>>, vector<1x1x8x14xf32>
    %60 = vector.shape_cast %59 : vector<1x1x8x14xf32> to vector<8x14xf32>
    %61 = vector.shape_cast %58 : vector<8x14xf32> to vector<1x1x8x14xf32>
    tpu.vector_store %arg6[%c0_53, %c1_54, %c0_55, %c0_56], %61 {strides = array<i32>} : memref<1x4x8x14xf32, #tpu.memory_space<vmem>>, vector<1x1x8x14xf32>,
    %c2_57 = arith.constant 2 : index
    %62 = memref.load %arg4[%c2_57] : memref<4xf32, #tpu.memory_space<smem>>
    %63 = vector.broadcast %62 : f32 to vector<8x14xf32>
    %64 = arith.mulf %63, %39 : vector<8x14xf32>
    %c2_58 = arith.constant 2 : index
    %65 = memref.load %arg5[%c2_58] : memref<4xf32, #tpu.memory_space<smem>>
    %66 = vector.broadcast %65 : f32 to vector<8x14xf32>
    %67 = arith.addf %64, %66 : vector<8x14xf32>
    %c0_59 = arith.constant 0 : index
    %c2_60 = arith.constant 2 : index
    %c0_61 = arith.constant 0 : index
    %c0_62 = arith.constant 0 : index
    %68 = vector.load %arg6[%c0_59, %c2_60, %c0_61, %c0_62] : memref<1x4x8x14xf32, #tpu.memory_space<vmem>>, vector<1x1x8x14xf32>
    %69 = vector.shape_cast %68 : vector<1x1x8x14xf32> to vector<8x14xf32>
    %70 = vector.shape_cast %67 : vector<8x14xf32> to vector<1x1x8x14xf32>
    tpu.vector_store %arg6[%c0_59, %c2_60, %c0_61, %c0_62], %70 {strides = array<i32>} : memref<1x4x8x14xf32, #tpu.memory_space<vmem>>, vector<1x1x8x14xf32>,
    %c3 = arith.constant 3 : index
    %71 = memref.load %arg4[%c3] : memref<4xf32, #tpu.memory_space<smem>>
    %72 = vector.broadcast %71 : f32 to vector<8x14xf32>
    %73 = arith.mulf %72, %43 : vector<8x14xf32>
    %c3_63 = arith.constant 3 : index
    %74 = memref.load %arg5[%c3_63] : memref<4xf32, #tpu.memory_space<smem>>
    %75 = vector.broadcast %74 : f32 to vector<8x14xf32>
    %76 = arith.addf %73, %75 : vector<8x14xf32>
    %c0_64 = arith.constant 0 : index
    %c3_65 = arith.constant 3 : index
    %c0_66 = arith.constant 0 : index
    %c0_67 = arith.constant 0 : index
    %77 = vector.load %arg6[%c0_64, %c3_65, %c0_66, %c0_67] : memref<1x4x8x14xf32, #tpu.memory_space<vmem>>, vector<1x1x8x14xf32>
    %78 = vector.shape_cast %77 : vector<1x1x8x14xf32> to vector<8x14xf32>
    %79 = vector.shape_cast %76 : vector<8x14xf32> to vector<1x1x8x14xf32>
    tpu.vector_store %arg6[%c0_64, %c3_65, %c0_66, %c0_67], %79 {strides = array<i32>} : memref<1x4x8x14xf32, #tpu.memory_space<vmem>>, vector<1x1x8x14xf32>,
    return
  }
  func.func @transform_0(%arg0: i32, %arg1: i32) -> (i32, i32, i32, i32) {
    %c0_i32 = arith.constant 0 : i32
    %c0_i32_0 = arith.constant 0 : i32
    %c0_i32_1 = arith.constant 0 : i32
    return %arg0, %c0_i32, %arg1, %c0_i32_0 : i32, i32, i32, i32
  }
  func.func @transform_1(%arg0: i32, %arg1: i32) -> (i32, i32, i32, i32) {
    %c1_i32 = arith.constant 1 : i32
    %0 = arith.addi %arg1, %c1_i32 : i32
    %c1_i32_0 = arith.constant 1 : i32
    %1 = arith.muli %0, %c1_i32_0 : i32
    %c1_i32_1 = arith.constant 1 : i32
    %2 = arith.minsi %1, %c1_i32_1 : i32
    %c0_i32 = arith.constant 0 : i32
    %c0_i32_2 = arith.constant 0 : i32
    %c0_i32_3 = arith.constant 0 : i32
    return %arg0, %c0_i32, %2, %c0_i32_2 : i32, i32, i32, i32
  }
  func.func @transform_2(%arg0: i32, %arg1: i32) -> i32 {
    %c0_i32 = arith.constant 0 : i32
    %c0_i32_0 = arith.constant 0 : i32
    return %c0_i32 : i32
  }
  func.func @transform_3(%arg0: i32, %arg1: i32) -> i32 {
    %c0_i32 = arith.constant 0 : i32
    %c0_i32_0 = arith.constant 0 : i32
    return %c0_i32 : i32
  }
  func.func @transform_4(%arg0: i32, %arg1: i32) -> (i32, i32, i32, i32) {
    %c0_i32 = arith.constant 0 : i32
    %c0_i32_0 = arith.constant 0 : i32
    %c0_i32_1 = arith.constant 0 : i32
    return %arg0, %c0_i32, %arg1, %c0_i32_0 : i32, i32, i32, i32
  }
}

</mosaic_0001>

<llo_original>
// kernel: tpu_custom_call.1
$region0: #{tpu_custom_call.1}
  #allocation0 [shape = 'u32[]', space=smem, size = 0x4, offset = 0x4, fixed_abs, tag = 'smem constant byte address 0x4 - core index']
  #allocation1 [shape = 'u32[72,128]{1,0:T(1,128)}', space=vmem, size = 0x9000, scoped, tag = 'internal scratch']
  #allocation2 [shape = 'f32[16,16]{1,0:T(8,128)}', space=vmem, size = 0x2000, scoped, tag = 'scratch operand']
  #allocation3 [shape = 'f32[10,14]{1,0:T(8,128)}', space=vmem, size = 0x2000, scoped, tag = 'scratch operand']
  #allocation4 [shape = 'f32[10,14]{1,0:T(8,128)}', space=vmem, size = 0x2000, scoped, tag = 'scratch operand']
  #allocation5 [shape = 'f32[10,14]{1,0:T(8,128)}', space=vmem, size = 0x2000, scoped, tag = 'scratch operand']
  #allocation6 [shape = 'f32[10,14]{1,0:T(8,128)}', space=vmem, size = 0x2000, scoped, tag = 'scratch operand']
  %s0 = inlined_call_operand.hbm [shape: f32[2,3,16,16], index: 0, kind: input, shape index: {}]
  %s1 = inlined_call_operand.hbm [shape: f32[2,3,16,16], index: 1, kind: input, shape index: {}]
  %s2 = inlined_call_operand.vmem [shape: f32[4], index: 2, kind: input, shape index: {}]
  %s3 = inlined_call_operand.vmem [shape: f32[4], index: 3, kind: input, shape index: {}]
  %s4 = inlined_call_operand.vmem [shape: f32[2,4,14,14], index: 4, kind: output, shape index: {}]
  %s5 = sld [smem:[#allocation0]]
  $region99: #{tpu_custom_call.1} parent=0
    _
  %s7 = ssub.s32 1, %s5
  %s8 = scalar_select 0, %s7, %s5
  $region1: #{tpu_custom_call.1} parent=0
    #allocation7 [shape = 'u8[24576]{0}', space=vmem, size = 0x6000, scoped, tag = 'input window, operand 0']
    #allocation8 [shape = 's32[2]{0}', space=sflag, size = 0x8, scoped, tag = 'scoped memory for tpu_custom_call.1']
    #allocation9 [shape = 's32[2]{0}', space=sflag, size = 0x8, scoped, tag = 'scoped memory for tpu_custom_call.1']
    #allocation10 [shape = 'u8[24576]{0}', space=vmem, size = 0x6000, scoped, tag = 'input window, operand 1']
    #allocation11 [shape = 's32[2]{0}', space=sflag, size = 0x8, scoped, tag = 'scoped memory for tpu_custom_call.1']
    #allocation12 [shape = 'u8[512]{0}', space=smem, size = 0x200, scoped, tag = 'input window, operand 2, single buffered']
    #allocation13 [shape = 'u8[512]{0}', space=smem, size = 0x200, scoped, tag = 'input window, operand 3, single buffered']
    #allocation14 [shape = 's32[1]{0}', space=sflag, size = 0x4, scoped, tag = 'scoped memory for tpu_custom_call.1']
    #allocation15 [shape = 'u8[32768]{0}', space=vmem, size = 0x8000, scoped, tag = 'output window, operand 0']
    %9 = vsyncpa [#allocation8], 0
    %s10 = scalar_lea.sflag [#allocation8], 1
    %11 = vsyncpa %s10, 0
    %12 = vsyncpa [#allocation11], 0
    %s13 = scalar_lea.sflag [#allocation11], 1
    %14 = vsyncpa %s13, 0
    %15 = vsyncpa [#allocation9], 0
    %16 = vsyncpa [#allocation14], 0
    loop: start=0, step=1, limit=6
    $region2: #{tpu_custom_call.1} parent=1 // loop_pre_header
      _
    $region3: #{tpu_custom_call.1} parent=1 // loop_header
      %s18 = sphi 0, %s22
      %p19 = scmp.ge.s32.totalorder %s18, 6
      %s25 = sphi 0, %s37
      %s26 = sphi 0, %s33
      %s27 = sphi 0, %s25
      %s28 = sphi 0, %s26
      %s29 = sphi 0, %s27
      %s30 = sphi 0, %s28
      %s42 = sphi 0, %s44
      %s45 = sphi 0, %s42
      %s46 = sphi 0, %s45
      %s62 = sphi 0, %s46
      %s76 = sphi 0, %s78
      %s79 = sphi 0, %s76
      %s80 = sphi 0, %s79
      %s96 = sphi 0, %s80
      %s100 = sphi 0, %s100
      %s102 = sphi 0, %s100
      %s103 = sphi 0, %s102
      %s117 = sphi 0, %s103
      %s121 = sphi 0, %s121
      %s123 = sphi 0, %s121
      %s124 = sphi 0, %s123
      %s138 = sphi 0, %s124
      %s146 = sphi 0, %s148
      %s149 = sphi 0, %s146
      %s150 = sphi 0, %s149
      %s166 = sphi 0, %s150
    $region4: #{tpu_custom_call.1} parent=1 // loop_header_branch
      %21 = sbr.rel (%p19) target = $region8
    $region5: #{tpu_custom_call.1} parent=1 // loop_body
      %s23 = ssub.s32 %s18, 1
      %s24 = ssub.s32 %s18, 2
      %s31 = sadd.s32 1, %s26
      %p32 = scmp.ge.s32.totalorder %s31, 2
      %s33 = scalar_select %p32, 0, %s31
      %s34 = sadd.s32 1, %s25
      %s35 = scalar_select %p32, %s34, %s25
      %p36 = scmp.ge.s32.totalorder %s35, 2
      %s37 = scalar_select %p36, 0, %s35
      %s38 = ssub.s32 %s25, %s37
      %s39 = ssub.s32 %s26, %s33
      %s40 = sor.u32 %s38, %s39
      %p41 = scmp.eq.s32.totalorder %s40, 0
      %s43 = sadd.s32 %s42, 1
      %s44 = scalar_select %p41, %s42, %s43
      %p47 = pneg %p41
      %p48 = scmp.eq.s32.totalorder %s18, 3
      %p49 = por %p47, %p48
      %p50 = scmp.ne.s32.totalorder %s42, %s45
      %p51 = scmp.eq.s32.totalorder %s18, 0
      %p52 = por %p50, %p51
      %p53 = scmp.ne.s32.totalorder %s42, %s45
      %p54 = scmp.eq.s32.totalorder %s23, 3
      %p55 = por %p53, %p54
      %p56 = scmp.ne.s32.totalorder %s45, %s46
      %p57 = scmp.eq.s32.totalorder %s23, 0
      %p58 = por %p56, %p57
      %p59 = scmp.ne.s32.totalorder %s45, %s46
      %p60 = scmp.eq.s32.totalorder %s24, 3
      %p61 = por %p59, %p60
      %p63 = scmp.ne.s32.totalorder %s46, %s62
      %p64 = scmp.eq.s32.totalorder %s24, 0
      %p65 = por %p63, %p64
      %s66 = sadd.s32 %s26, 1
      %p67 = scmp.lt.s32.totalorder %s66, 1
      %s68 = scalar_select %p67, %s66, 1
      %s69 = sadd.s32 %s33, 1
      %p70 = scmp.lt.s32.totalorder %s69, 1
      %s71 = scalar_select %p70, %s69, 1
      %s72 = ssub.s32 %s25, %s37
      %s73 = ssub.s32 %s68, %s71
      %s74 = sor.u32 %s72, %s73
      %p75 = scmp.eq.s32.totalorder %s74, 0
      %s77 = sadd.s32 %s76, 1
      %s78 = scalar_select %p75, %s76, %s77
      %p81 = pneg %p75
      %p82 = scmp.eq.s32.totalorder %s18, 3
      %p83 = por %p81, %p82
      %p84 = scmp.ne.s32.totalorder %s76, %s79
      %p85 = scmp.eq.s32.totalorder %s18, 0
      %p86 = por %p84, %p85
      %p87 = scmp.ne.s32.totalorder %s76, %s79
      %p88 = scmp.eq.s32.totalorder %s23, 3
      %p89 = por %p87, %p88
      %p90 = scmp.ne.s32.totalorder %s79, %s80
      %p91 = scmp.eq.s32.totalorder %s23, 0
      %p92 = por %p90, %p91
      %p93 = scmp.ne.s32.totalorder %s79, %s80
      %p94 = scmp.eq.s32.totalorder %s24, 3
      %p95 = por %p93, %p94
      %p97 = scmp.ne.s32.totalorder %s80, %s96
      %p98 = scmp.eq.s32.totalorder %s24, 0
      %p99 = por %p97, %p98
      %s101 = sadd.s32 %s100, 1
      %p104 = scmp.eq.s32.totalorder %s18, 3
      %p105 = scmp.ne.s32.totalorder %s100, %s102
      %p106 = scmp.eq.s32.totalorder %s18, 0
      %p107 = por %p105, %p106
      %p108 = scmp.ne.s32.totalorder %s100, %s102
      %p109 = scmp.eq.s32.totalorder %s23, 3
      %p110 = por %p108, %p109
      %p111 = scmp.ne.s32.totalorder %s102, %s103
      %p112 = scmp.eq.s32.totalorder %s23, 0
      %p113 = por %p111, %p112
      %p114 = scmp.ne.s32.totalorder %s102, %s103
      %p115 = scmp.eq.s32.totalorder %s24, 3
      %p116 = por %p114, %p115
      %p118 = scmp.ne.s32.totalorder %s103, %s117
      %p119 = scmp.eq.s32.totalorder %s24, 0
      %p120 = por %p118, %p119
      %s122 = sadd.s32 %s121, 1
      %p125 = scmp.eq.s32.totalorder %s18, 3
      %p126 = scmp.ne.s32.totalorder %s121, %s123
      %p127 = scmp.eq.s32.totalorder %s18, 0
      %p128 = por %p126, %p127
      %p129 = scmp.ne.s32.totalorder %s121, %s123
      %p130 = scmp.eq.s32.totalorder %s23, 3
      %p131 = por %p129, %p130
      %p132 = scmp.ne.s32.totalorder %s123, %s124
      %p133 = scmp.eq.s32.totalorder %s23, 0
      %p134 = por %p132, %p133
      %p135 = scmp.ne.s32.totalorder %s123, %s124
      %p136 = scmp.eq.s32.totalorder %s24, 3
      %p137 = por %p135, %p136
      %p139 = scmp.ne.s32.totalorder %s124, %s138
      %p140 = scmp.eq.s32.totalorder %s24, 0
      %p141 = por %p139, %p140
      %s142 = ssub.s32 %s25, %s37
      %s143 = ssub.s32 %s26, %s33
      %s144 = sor.u32 %s142, %s143
      %p145 = scmp.eq.s32.totalorder %s144, 0
      %s147 = sadd.s32 %s146, 1
      %s148 = scalar_select %p145, %s146, %s147
      %p151 = pneg %p145
      %p152 = scmp.eq.s32.totalorder %s18, 3
      %p153 = por %p151, %p152
      %p154 = scmp.ne.s32.totalorder %s146, %s149
      %p155 = scmp.eq.s32.totalorder %s18, 0
      %p156 = por %p154, %p155
      %p157 = scmp.ne.s32.totalorder %s146, %s149
      %p158 = scmp.eq.s32.totalorder %s23, 3
      %p159 = por %p157, %p158
      %p160 = scmp.ne.s32.totalorder %s149, %s150
      %p161 = scmp.eq.s32.totalorder %s23, 0
      %p162 = por %p160, %p161
      %p163 = scmp.ne.s32.totalorder %s149, %s150
      %p164 = scmp.eq.s32.totalorder %s24, 3
      %p165 = por %p163, %p164
      %p167 = scmp.ne.s32.totalorder %s150, %s166
      %p168 = scmp.eq.s32.totalorder %s24, 0
      %p169 = por %p167, %p168
      %p170 = scmp.le.s32.totalorder 1, %s18
      %p171 = scmp.lt.s32.totalorder %s18, 5
      %p172 = pnand %p170, %p171
      %p173 = pneg %p172
      // Predicated region
      $region9: #{tpu_custom_call.1} parent=5 // pred_check
        _
      $region10: #{tpu_custom_call.1} parent=5 // pred_check_branch
        %175 = sbr.rel (%p172) target = $region12
      $region11: #{tpu_custom_call.1} parent=5 // pred_region
        %s176 = ssub.s32 %s18, 1
        // Predicated region
        $region13: #{tpu_custom_call.1} parent=11 // pred_check
          %p177 = pneg %p113
        $region14: #{tpu_custom_call.1} parent=11 // pred_check_branch
          %179 = sbr.rel (%p177) target = $region16
        $region15: #{tpu_custom_call.1} parent=11 // pred_region
          %181 = vsyncadd [#allocation9], 0
          %s183 = sshll.u32 %s2, 4
          %s184 = int_to_ptr.vmem [resolvable:$true] %s183
          %186 = dma.vmem_to_smem %s184, 16, [#allocation12], [#allocation9]
        $region16: #{tpu_custom_call.1} parent=11 // pred_fallthru
          _
        // Predicated region
        $region17: #{tpu_custom_call.1} parent=11 // pred_check
          %p187 = pneg %p134
        $region18: #{tpu_custom_call.1} parent=11 // pred_check_branch
          %189 = sbr.rel (%p187) target = $region20
        $region19: #{tpu_custom_call.1} parent=11 // pred_region
          %191 = vsyncadd [#allocation14], 0
          %s193 = sshll.u32 %s3, 4
          %s194 = int_to_ptr.vmem [resolvable:$true] %s193
          %196 = dma.vmem_to_smem %s194, 16, [#allocation13], [#allocation14]
        $region20: #{tpu_custom_call.1} parent=11 // pred_fallthru
          _
      $region12: #{tpu_custom_call.1} parent=5 // pred_fallthru
        _
      %p197 = scmp.lt.s32.totalorder %s18, 4
      // Predicated region
      $region21: #{tpu_custom_call.1} parent=5 // pred_check
        %p198 = pneg %p197
      $region22: #{tpu_custom_call.1} parent=5 // pred_check_branch
        %200 = sbr.rel (%p198) target = $region24
      $region23: #{tpu_custom_call.1} parent=5 // pred_region
        // Predicated region
        $region25: #{tpu_custom_call.1} parent=23 // pred_check
          %p201 = pneg %p52
        $region26: #{tpu_custom_call.1} parent=23 // pred_check_branch
          %203 = sbr.rel (%p201) target = $region28
        $region27: #{tpu_custom_call.1} parent=23 // pred_region
          %s204 = sand.u32 %s42, 1
          %s205 = scalar_lea.sflag [#allocation8], %s204
          %s206 = sand.u32 %s42, 1
          %s207 = smul.addr %s206, 24
          %s208 = scalar_lea.vmem [#allocation7], %s207
          %210 = vsyncadd %s205, 0
          %s211 = smul.addr %s25, 6
          %s212 = sadd.s32 %s26, %s211
          %s213 = smul.addr %s212, 8
          %s214 = scalar_lea.hbm %s0, %s213
          %s215 = sshll.u32 %s214, 4
          %s216 = int_to_ptr.hbm [resolvable:$true] %s215
          %s217 = sshll.u32 %s208, 4
          %s218 = int_to_ptr.vmem [resolvable:$true] %s217
          %223 = dma.hbm_to_vmem [thread:$0]  %s216, 384, %s218, %s205, 256, 128, 8
        $region28: #{tpu_custom_call.1} parent=23 // pred_fallthru
          _
        // Predicated region
        $region29: #{tpu_custom_call.1} parent=23 // pred_check
          %p224 = pneg %p86
        $region30: #{tpu_custom_call.1} parent=23 // pred_check_branch
          %226 = sbr.rel (%p224) target = $region32
        $region31: #{tpu_custom_call.1} parent=23 // pred_region
          %s227 = sand.u32 %s76, 1
          %s228 = scalar_lea.sflag [#allocation11], %s227
          %s229 = sand.u32 %s76, 1
          %s230 = smul.addr %s229, 24
          %s231 = scalar_lea.vmem [#allocation10], %s230
          %s232 = sadd.s32 %s26, 1
          %p233 = scmp.lt.s32.totalorder %s232, 1
          %s234 = scalar_select %p233, %s232, 1
          %236 = vsyncadd %s228, 0
          %s237 = smul.addr %s25, 6
          %s238 = sadd.s32 %s234, %s237
          %s239 = smul.addr %s238, 8
          %s240 = scalar_lea.hbm %s1, %s239
          %s241 = sshll.u32 %s240, 4
          %s242 = int_to_ptr.hbm [resolvable:$true] %s241
          %s243 = sshll.u32 %s231, 4
          %s244 = int_to_ptr.vmem [resolvable:$true] %s243
          %249 = dma.hbm_to_vmem [thread:$0]  %s242, 384, %s244, %s228, 256, 128, 8
        $region32: #{tpu_custom_call.1} parent=23 // pred_fallthru
          _
      $region24: #{tpu_custom_call.1} parent=5 // pred_fallthru
        _
      %p250 = scmp.le.s32.totalorder 1, %s18
      %p251 = scmp.lt.s32.totalorder %s18, 5
      %p252 = pnand %p250, %p251
      %p253 = pneg %p252
      // Predicated region
      $region33: #{tpu_custom_call.1} parent=5 // pred_check
        _
      $region34: #{tpu_custom_call.1} parent=5 // pred_check_branch
        %255 = sbr.rel (%p252) target = $region36
      $region35: #{tpu_custom_call.1} parent=5 // pred_region
        %s256 = ssub.s32 %s18, 1
        %s257 = sand.u32 %s45, 1
        %s258 = scalar_lea.sflag [#allocation8], %s257
        %s259 = sand.u32 %s45, 1
        %s260 = smul.addr %s259, 24
        %s261 = scalar_lea.vmem [#allocation7], %s260
        // Predicated region
        $region37: #{tpu_custom_call.1} parent=35 // pred_check
          %p262 = pneg %p58
        $region38: #{tpu_custom_call.1} parent=35 // pred_check_branch
          %264 = sbr.rel (%p262) target = $region40
        $region39: #{tpu_custom_call.1} parent=35 // pred_region
          %266 = dma.done %s258, 384
        $region40: #{tpu_custom_call.1} parent=35 // pred_fallthru
          _
        %s267 = sand.u32 %s79, 1
        %s268 = scalar_lea.sflag [#allocation11], %s267
        %s269 = sand.u32 %s79, 1
        %s270 = smul.addr %s269, 24
        %s271 = scalar_lea.vmem [#allocation10], %s270
        // Predicated region
        $region41: #{tpu_custom_call.1} parent=35 // pred_check
          %p272 = pneg %p92
        $region42: #{tpu_custom_call.1} parent=35 // pred_check_branch
          %274 = sbr.rel (%p272) target = $region44
        $region43: #{tpu_custom_call.1} parent=35 // pred_region
          %276 = dma.done %s268, 384
        $region44: #{tpu_custom_call.1} parent=35 // pred_fallthru
          _
        // Predicated region
        $region45: #{tpu_custom_call.1} parent=35 // pred_check
          %p277 = pneg %p113
        $region46: #{tpu_custom_call.1} parent=35 // pred_check_branch
          %279 = sbr.rel (%p277) target = $region48
        $region47: #{tpu_custom_call.1} parent=35 // pred_region
          %281 = dma.done [#allocation9], 16
        $region48: #{tpu_custom_call.1} parent=35 // pred_fallthru
          _
        // Predicated region
        $region49: #{tpu_custom_call.1} parent=35 // pred_check
          %p282 = pneg %p134
        $region50: #{tpu_custom_call.1} parent=35 // pred_check_branch
          %284 = sbr.rel (%p282) target = $region52
        $region51: #{tpu_custom_call.1} parent=35 // pred_region
          %286 = dma.done [#allocation14], 16
        $region52: #{tpu_custom_call.1} parent=35 // pred_fallthru
          _
        %287 = sfence
        %s288 = sand.u32 %s45, 1
        %s289 = scalar_lea.sflag [#allocation8], %s288
        %s290 = sand.u32 %s45, 1
        %s291 = smul.addr %s290, 24
        %s292 = scalar_lea.vmem [#allocation7], %s291
        %p293 = pneg %p58
        %p294 = pneg %p55
        %s295 = sand.u32 %s79, 1
        %s296 = scalar_lea.sflag [#allocation11], %s295
        %s297 = sand.u32 %s79, 1
        %s298 = smul.addr %s297, 24
        %s299 = scalar_lea.vmem [#allocation10], %s298
        %p300 = pneg %p92
        %p301 = pneg %p89
        %p302 = pneg %p113
        %p303 = pneg %p110
        %p304 = pneg %p134
        %p305 = pneg %p131
        %p306 = pneg %p162
        %p307 = pneg %p159
        %s308 = sand.u32 %s149, 1
        %s309 = sand.u32 %s149, 1
        %s310 = smul.addr %s309, 32
        %s311 = scalar_lea.vmem [#allocation15], %s310
        %s312 = sadd.s32 %s28, 1
        %p313 = scmp.lt.s32.totalorder %s312, 1
        %s314 = scalar_select %p313, %s312, 1
        %v315 = vld [vmem:[%s261] sm:$0xff]
        %v316 = vld [vmem:[%s261 + $0x8] sm:$0xff]
        %v317 = vld [vmem:[%s261 + $0x10] sm:$0xff]
        %vm318 = vcmask 130048
        %v319 = vsel %vm318, %v315, 0.0
        %v320 = vsel %vm318, %v316, 0.0
        %v321 = vadd.f32 %v319, %v320
        %v322 = vsel %vm318, %v317, 0.0
        %v323 = vadd.f32 %v321, %v322
        %324 = vst.msk [vmem:[#allocation2] sm:$0xff] %vm318, %v323
        %v325 = vld [vmem:[%s271] sm:$0xff]
        %v326 = vld [vmem:[%s271 + $0x8] sm:$0xff]
        %v327 = vld [vmem:[%s271 + $0x10] sm:$0xff]
        %v328 = vsel %vm318, %v325, 0.0
        %v329 = vsel %vm318, %v326, 0.0
        %v330 = vadd.f32 %v328, %v329
        %v331 = vsel %vm318, %v327, 0.0
        %v332 = vadd.f32 %v330, %v331
        %333 = vst.msk [vmem:[#allocation2 + $0x8] sm:$0xff] %vm318, %v332
        %v334 = vld [vmem:[#allocation2] sm:$0xff]
        %v335 = vld [vmem:[#allocation2 + $0x8] sm:$0x3]
        %338 = vrot.lane.b32.xlu0 %v334, 2
        %v339 = vpop.permute.xlu0 %338
        %340 = vrot.lane.b32.xlu0 %v335, 2
        %v341 = vpop.permute.xlu0 %340
        %v344 = vsub.f32 %v334, %v339
        %v345 = vsub.f32 %v335, %v341
        %348 = vrot.lane.b32.xlu0 %v344, 126
        %v349 = vpop.permute.xlu0 %348
        %350 = vrot.lane.b32.xlu0 %v345, 126
        %v351 = vpop.permute.xlu0 %350
        %vm354 = vcmask 113664
        %355 = vst.msk [vmem:[#allocation3] sm:$0xff] %vm354, %v349
        %vm356 = vcmask 107520
        %357 = vst.msk [vmem:[#allocation3 + $0x8] sm:$0x3] %vm356, %v351
        %358 = vrot.lane.b32.xlu0 %v334, 126
        %v359 = vpop.permute.xlu0 %358
        %360 = vrot.lane.b32.xlu0 %v335, 126
        %v361 = vpop.permute.xlu0 %360
        %v364 = vadd.f32 %v334, %v359
        %v365 = vadd.f32 %v335, %v361
        %v366 = vmul.f32 %v334, 2.0
        %v367 = vmul.f32 %v335, 2.0
        %370 = vrot.lane.b32.xlu0 %v366, 127
        %v371 = vpop.permute.xlu0 %370
        %372 = vrot.lane.b32.xlu0 %v367, 127
        %v373 = vpop.permute.xlu0 %372
        %v376 = vadd.f32 %v364, %v371
        %v377 = vadd.f32 %v365, %v373
        %378 = vst.msk [vmem:[#allocation4] sm:$0xff] %vm354, %v376
        %379 = vst.msk [vmem:[#allocation4 + $0x8] sm:$0x3] %vm356, %v377
        %380 = vrot.lane.b32.xlu0 %v334, 127
        %v381 = vpop.permute.xlu0 %380
        %382 = vrot.lane.b32.xlu0 %v335, 127
        %v383 = vpop.permute.xlu0 %382
        %v386 = vadd.f32 %v366, %v381
        %v387 = vadd.f32 %v367, %v383
        %388 = vst.msk [vmem:[#allocation5] sm:$0xff] %vm354, %v386
        %389 = vst.msk [vmem:[#allocation5 + $0x8] sm:$0x3] %vm356, %v387
        %v390 = vadd.f32 %v334, %v371
        %v391 = vadd.f32 %v335, %v373
        %394 = vrot.lane.b32.xlu0 %v390, 127
        %v395 = vpop.permute.xlu0 %394
        %396 = vrot.lane.b32.xlu0 %v391, 127
        %v397 = vpop.permute.xlu0 %396
        %400 = vst.msk [vmem:[#allocation6] sm:$0xff] %vm354, %v395
        %401 = vst.msk [vmem:[#allocation6 + $0x8] sm:$0x3] %vm356, %v397
        %v402 = vld [vmem:[#allocation3 + $0x1] sm:$0xff]
        %v403 = vld [vmem:[#allocation4 + $0x2] sm:$0xff]
        %v404 = vld [vmem:[#allocation4] sm:$0xff]
        %v405 = vsub.f32 %v403, %v404
        %v406 = vld [vmem:[#allocation3] sm:$0xff]
        %v407 = vmul.f32 %v402, 2.0
        %v408 = vadd.f32 %v406, %v407
        %v409 = vld [vmem:[#allocation3 + $0x2] sm:$0xff]
        %v410 = vadd.f32 %v408, %v409
        %v411 = vld [vmem:[#allocation6 + $0x2] sm:$0xff]
        %v412 = vadd.f32 %v402, %v411
        %v413 = vld [vmem:[#allocation5] sm:$0xff]
        %v414 = vsub.f32 %v412, %v413
        %v415 = vld [vmem:[#allocation6] sm:$0xff]
        %v416 = vadd.f32 %v402, %v415
        %v417 = vld [vmem:[#allocation5 + $0x2] sm:$0xff]
        %v418 = vsub.f32 %v416, %v417
        %s419 = sld [smem:[#allocation12]]
        %v420 = vstv %s419
        %v421 = vmul.f32 %v420, %v405
        %s422 = sld [smem:[#allocation13]]
        %v423 = vstv %s422
        %v424 = vadd.f32 %v421, %v423
        %425 = vst.msk [vmem:[%s311] sm:$0xff] %vm354, %v424
        %s426 = sld [smem:[#allocation12 + $0x1]]
        %v427 = vstv %s426
        %v428 = vmul.f32 %v427, %v410
        %s429 = sld [smem:[#allocation13 + $0x1]]
        %v430 = vstv %s429
        %v431 = vadd.f32 %v428, %v430
        %s432 = scalar_lea.vmem %s311, 8 [#allocation15]
        %433 = vst.msk [vmem:[%s432] sm:$0xff] %vm354, %v431
        %s434 = sld [smem:[#allocation12 + $0x2]]
        %v435 = vstv %s434
        %v436 = vmul.f32 %v435, %v414
        %s437 = sld [smem:[#allocation13 + $0x2]]
        %v438 = vstv %s437
        %v439 = vadd.f32 %v436, %v438
        %s440 = scalar_lea.vmem %s311, 16 [#allocation15]
        %441 = vst.msk [vmem:[%s440] sm:$0xff] %vm354, %v439
        %s442 = sld [smem:[#allocation12 + $0x3]]
        %v443 = vstv %s442
        %v444 = vmul.f32 %v443, %v418
        %s445 = sld [smem:[#allocation13 + $0x3]]
        %v446 = vstv %s445
        %v447 = vadd.f32 %v444, %v446
        %s448 = scalar_lea.vmem %s311, 24 [#allocation15]
        %449 = vst.msk [vmem:[%s448] sm:$0xff] %vm354, %v447
        %s450 = sand.u32 %s149, 1
        %s451 = sand.u32 %s149, 1
        %s452 = smul.addr %s451, 32
        %s453 = scalar_lea.vmem [#allocation15], %s452
        // Predicated region
        $region53: #{tpu_custom_call.1} parent=35 // pred_check
          %p454 = pneg %p159
        $region54: #{tpu_custom_call.1} parent=35 // pred_check_branch
          %456 = sbr.rel (%p454) target = $region56
        $region55: #{tpu_custom_call.1} parent=35 // pred_region
          %s457 = smul.addr %s27, 8
          %s458 = sadd.s32 %s28, %s457
          %s459 = smul.addr %s458, 8
          %s460 = scalar_lea.vmem %s4, %s459
          // Predicated region
          $region57: #{tpu_custom_call.1} parent=55 // pred_check
            _
          $region58: #{tpu_custom_call.1} parent=55 // pred_check_branch
            %462 = sbr.rel (0) target = $region60
          $region59: #{tpu_custom_call.1} parent=55 // pred_region
            // Predicated region
            $region61: #{tpu_custom_call.1} parent=59 // pred_check
              _
            $region62: #{tpu_custom_call.1} parent=59 // pred_check_branch
              %464 = sbr.rel (0) target = $region64
            $region63: #{tpu_custom_call.1} parent=59 // pred_region
              // Predicated region
              $region76: #{tpu_custom_call.1} parent=63 // pred_check
                _
              $region77: #{tpu_custom_call.1} parent=63 // pred_check_branch
                %486 = sbr.rel (0) target = $region79
              $region78: #{tpu_custom_call.1} parent=63 // pred_region
                loop: start=0, step=1, limit=1
                $region80: #{tpu_custom_call.1} parent=78 // loop_pre_header
                  _
                $region81: #{tpu_custom_call.1} parent=78 // loop_header
                  %s488 = sphi 0, %s492
                  %p489 = scmp.ge.s32.totalorder %s488, 1
                  %s493 = sphi %s453, %s453
                  %s494 = sphi %s460, %s460
                $region82: #{tpu_custom_call.1} parent=78 // loop_header_branch
                  %491 = sbr.rel (%p489) target = $region86
                $region83: #{tpu_custom_call.1} parent=78 // loop_body
                  %v495 = vld [vmem:[%s493] sm:$0xff]
                  %496 = vst [vmem:[%s494] sm:$0xff] %v495
                  %v497 = vld [vmem:[%s493 + $0x8] sm:$0xff]
                  %498 = vst [vmem:[%s494 + $0x10] sm:$0xff] %v497
                  %v499 = vld [vmem:[%s493 + $0x10] sm:$0xff]
                  %500 = vst [vmem:[%s494 + $0x20] sm:$0xff] %v499
                  %v501 = vld [vmem:[%s493 + $0x18] sm:$0xff]
                  %502 = vst [vmem:[%s494 + $0x30] sm:$0xff] %v501
                $region84: #{tpu_custom_call.1} parent=78 // loop_footer
                  %s492 = sadd.s32 1, %s488
                $region85: #{tpu_custom_call.1} parent=78 // loop_footer_branch
                  %487 = sbr.rel target = $region81
                $region86: #{tpu_custom_call.1} parent=78 // loop_exit
                  _
              $region79: #{tpu_custom_call.1} parent=63 // pred_fallthru
                _
              // Predicated region
              $region87: #{tpu_custom_call.1} parent=63 // pred_check
                _
              $region88: #{tpu_custom_call.1} parent=63 // pred_check_branch
                %504 = sbr.rel target = $region90
              $region89: #{tpu_custom_call.1} parent=63 // pred_region
                _
              $region90: #{tpu_custom_call.1} parent=63 // pred_fallthru
                _
            $region64: #{tpu_custom_call.1} parent=59 // pred_fallthru
              _
            // Predicated region
            $region65: #{tpu_custom_call.1} parent=59 // pred_check
              _
            $region66: #{tpu_custom_call.1} parent=59 // pred_check_branch
              %466 = sbr.rel target = $region68
            $region67: #{tpu_custom_call.1} parent=59 // pred_region
              %s468 = ssub.s32 256, 1
              loop: start=0, step=1, limit=1
              $region69: #{tpu_custom_call.1} parent=67 // loop_pre_header
                _
              $region70: #{tpu_custom_call.1} parent=67 // loop_header
                %s470 = sphi 0, %s474
                %p471 = scmp.ge.s32.totalorder %s470, 1
                %s475 = sphi %s453, %s453
                %s476 = sphi %s460, %s460
              $region71: #{tpu_custom_call.1} parent=67 // loop_header_branch
                %473 = sbr.rel (%p471) target = $region75
              $region72: #{tpu_custom_call.1} parent=67 // loop_body
                %v477 = vld [vmem:[%s475] sm:%s468]
                %478 = vst [vmem:[%s476] sm:%s468] %v477
                %v479 = vld [vmem:[%s475 + $0x8] sm:%s468]
                %480 = vst [vmem:[%s476 + $0x10] sm:%s468] %v479
                %v481 = vld [vmem:[%s475 + $0x10] sm:%s468]
                %482 = vst [vmem:[%s476 + $0x20] sm:%s468] %v481
                %v483 = vld [vmem:[%s475 + $0x18] sm:%s468]
                %484 = vst [vmem:[%s476 + $0x30] sm:%s468] %v483
              $region73: #{tpu_custom_call.1} parent=67 // loop_footer
                %s474 = sadd.s32 1, %s470
              $region74: #{tpu_custom_call.1} parent=67 // loop_footer_branch
                %469 = sbr.rel target = $region70
              $region75: #{tpu_custom_call.1} parent=67 // loop_exit
                _
            $region68: #{tpu_custom_call.1} parent=59 // pred_fallthru
              _
          $region60: #{tpu_custom_call.1} parent=55 // pred_fallthru
            _
          %505 = vnop
        $region56: #{tpu_custom_call.1} parent=35 // pred_fallthru
          _
      $region36: #{tpu_custom_call.1} parent=5 // pred_fallthru
        _
      %p506 = scmp.le.s32.totalorder 2, %s18
      // Predicated region
      $region91: #{tpu_custom_call.1} parent=5 // pred_check
        %p507 = pneg %p506
      $region92: #{tpu_custom_call.1} parent=5 // pred_check_branch
        %509 = sbr.rel (%p507) target = $region94
      $region93: #{tpu_custom_call.1} parent=5 // pred_region
        %s510 = ssub.s32 %s18, 2
        // Predicated region
        $region95: #{tpu_custom_call.1} parent=93 // pred_check
          %p511 = pneg %p165
        $region96: #{tpu_custom_call.1} parent=93 // pred_check_branch
          %513 = sbr.rel (%p511) target = $region98
        $region97: #{tpu_custom_call.1} parent=93 // pred_region
          %s514 = sand.u32 %s150, 1
          %s515 = sand.u32 %s150, 1
          %s516 = smul.addr %s515, 32
          %s517 = scalar_lea.vmem [#allocation15], %s516
        $region98: #{tpu_custom_call.1} parent=93 // pred_fallthru
          _
      $region94: #{tpu_custom_call.1} parent=5 // pred_fallthru
        _
    $region6: #{tpu_custom_call.1} parent=1 // loop_footer
      %s22 = sadd.s32 1, %s18
    $region7: #{tpu_custom_call.1} parent=1 // loop_footer_branch
      %17 = sbr.rel target = $region3
    $region8: #{tpu_custom_call.1} parent=1 // loop_exit
      _
    %518 = vsyncpa [#allocation8], 1
    %s519 = scalar_lea.sflag [#allocation8], 1
    %520 = vsyncpa %s519, 1
    %521 = vsyncpa [#allocation11], 1
    %s522 = scalar_lea.sflag [#allocation11], 1
    %523 = vsyncpa %s522, 1
    %524 = vsyncpa [#allocation9], 1
    %s525 = scalar_lea.sflag [#allocation9], 1
    %526 = vsyncpa %s525, 1
    %527 = vsyncpa [#allocation14], 1

</llo_original>
